<compile_context>
chip_gen: v5e
topology: v5e:2x2
jax: 0.10.0
libtpu: 0.0.40
codegen_flags: <defaults>
</compile_context>

<pallas_src>
import math

import jax
import jax.numpy as jnp
from jax.experimental import pallas as pl
from jax.experimental.pallas import tpu as pltpu


def qconv_kernel(mh_ref, me_ref, h_ref, w1h_ref, w1e_ref, w2a_ref, w2b_ref,
                 b2_ref, o_ref):
    # mh_ref : [D, in_feat, TN]    bf16  gathered neighbor features (lane-dense)
    # me_ref : [D, e_pad,  TN]     bf16  edge features (feature dim padded 3->8)
    # h_ref  : [in_feat, TN]       bf16
    # w1h_ref: [inter, in_feat]    bf16  linear1 weight, h columns
    # w1e_ref: [inter, e_pad]      bf16  linear1 weight, edge columns (zero-padded)
    # w2a_ref: [out_feat, in_feat] bf16  linear2 weight, h half
    # w2b_ref: [out_feat, inter]   bf16  linear2 weight, h_N half (* 1/deg folded)
    # b2_ref : [out_feat, 1]       f32
    # o_ref  : [out_feat, TN]      f32
    deg = mh_ref.shape[0]

    # h_N * deg (1/deg is folded into W2b): fused per-neighbor
    # matmul + leaky_relu + accumulate -> no [D*TN, inter] temporary.
    h_n = None
    for d in range(deg):  # deg is small & static -> unrolled
        t = (jnp.dot(w1h_ref[...], mh_ref[d],
                     preferred_element_type=jnp.float32)
             + jnp.dot(w1e_ref[...], me_ref[d],
                       preferred_element_type=jnp.float32))
        t = jnp.where(t > 0, t, 0.01 * t)        # F.leaky_relu, slope 0.01 (f32)
        h_n = t if h_n is None else h_n + t      # [inter, TN] f32

    # linear2 on concat([h, h_N]) == W2a @ h + W2b @ h_N, then bias + relu.
    out = (jnp.dot(w2a_ref[...], h_ref[...],
                   preferred_element_type=jnp.float32)
           + jnp.dot(w2b_ref[...], h_n.astype(jnp.bfloat16),
                     preferred_element_type=jnp.float32)
           + b2_ref[...])
    o_ref[...] = jnp.maximum(out, 0.0)


def qconv_forward(mh_t, me_t, h_t, w1h, w1e, w2a, w2b, b2, *, tile_n=2048):
    """Lane-dense QConv forward.

    mh_t: [D, in_feat, N] bf16  gathered neighbor features (nodes in lanes)
    me_t: [D, e_pad,  N]  bf16  edge features (feature dim zero-padded)
    h_t : [in_feat, N]    bf16
    Returns [N, out_feat] f32.
    """
    deg, in_feat, n = mh_t.shape
    e_pad = me_t.shape[1]
    inter = w1h.shape[0]
    out_feat = w2a.shape[0]

    # Nodes live in the lane (fast) axis -> tiles are multiples of 128.
    n128 = pl.cdiv(n, 128) * 128
    tn = max(128, (min(tile_n, n128) // 128) * 128)
    # Keep >= 2 grid steps when the problem allows it (v7x has 2 TensorCores).
    if tn >= n128 and n128 >= 256:
        tn = (n128 // 2 // 128) * 128
    n_pad = pl.cdiv(n, tn) * tn

    if n_pad != n:
        mh_t = jnp.pad(mh_t, ((0, 0), (0, 0), (0, n_pad - n)))
        me_t = jnp.pad(me_t, ((0, 0), (0, 0), (0, n_pad - n)))
        h_t = jnp.pad(h_t, ((0, 0), (0, n_pad - n)))

    flops = 2 * n_pad * (deg * inter * (in_feat + e_pad)
                         + out_feat * (in_feat + inter))
    bytes_accessed = 2 * (mh_t.size + me_t.size + h_t.size) + 4 * n_pad * out_feat

    out_t = pl.pallas_call(
        qconv_kernel,
        out_shape=jax.ShapeDtypeStruct((out_feat, n_pad), jnp.float32),
        grid=(n_pad // tn,),
        in_specs=[
            pl.BlockSpec((deg, in_feat, tn), lambda i: (0, 0, i)),
            pl.BlockSpec((deg, e_pad, tn), lambda i: (0, 0, i)),
            pl.BlockSpec((in_feat, tn), lambda i: (0, i)),
            # Weights / bias: index_map -> (0, 0) keeps them VMEM-resident.
            pl.BlockSpec((inter, in_feat), lambda i: (0, 0)),
            pl.BlockSpec((inter, e_pad), lambda i: (0, 0)),
            pl.BlockSpec((out_feat, in_feat), lambda i: (0, 0)),
            pl.BlockSpec((out_feat, inter), lambda i: (0, 0)),
            pl.BlockSpec((out_feat, 1), lambda i: (0, 0)),
        ],
        out_specs=pl.BlockSpec((out_feat, tn), lambda i: (0, i)),
        compiler_params=pltpu.CompilerParams(
            dimension_semantics=("parallel",)),
        cost_estimate=pl.CostEstimate(flops=flops, transcendentals=0,
                                      bytes_accessed=bytes_accessed),
    )(mh_t, me_t, h_t, w1h, w1e, w2a, w2b, b2)

    # Padded columns compute relu(b2); they are sliced off here.
    return out_t[:, :n].T


def xavier_normal(key, shape_out_in, gain):
    fan_out, fan_in = shape_out_in
    std = gain * math.sqrt(2.0 / (fan_in + fan_out))
    return std * jax.random.normal(key, shape_out_in, dtype=jnp.float32)


if __name__ == "__main__":
    # Small shapes consistent with the module.
    in_feat, inter_dim, out_feat = 16, 32, 8
    N, D, E, E_PAD = 16, 4, 3, 8      # nodes, fixed in-degree, edge-feature dim

    key = jax.random.PRNGKey(0)
    k_h, k_idx, k_ew, k_w1, k_w2, k_b2 = jax.random.split(key, 6)

    gain = math.sqrt(2.0)             # nn.init.calculate_gain('relu')

    # Parameters (torch Linear stores [out, in]); deterministic init.
    w1 = xavier_normal(k_w1, (inter_dim, in_feat + E), gain)            # linear1, no bias
    w2 = xavier_normal(k_w2, (out_feat, in_feat + inter_dim), gain)     # linear2
    bound = 1.0 / math.sqrt(in_feat + inter_dim)
    b2 = jax.random.uniform(k_b2, (out_feat,), jnp.float32, -bound, bound)

    # Graph inputs.
    h = jax.random.normal(k_h, (N, in_feat), dtype=jnp.float32)
    nbr_idx = jax.random.randint(k_idx, (N, D), 0, N)                   # fixed-degree adjacency
    edge_w = jax.random.normal(k_ew, (N, D, E), dtype=jnp.float32)      # edge features (dim 3)

    # --- wrapper-side layout / quantization (XLA glue) --------------------
    h_bf = h.astype(jnp.bfloat16)
    edge_bf = edge_w.astype(jnp.bfloat16)

    # Lane-dense (features-in-sublane / nodes-in-lane) kernel inputs.
    # TODO(synk): neighbor gather h[nbr_idx] stays in XLA (see header note).
    mh_t = h_bf[nbr_idx].transpose(1, 2, 0)                             # [D, in_feat, N]
    me_t = jnp.pad(edge_bf, ((0, 0), (0, 0), (0, E_PAD - E))
                   ).transpose(1, 2, 0)                                 # [D, E_PAD, N]
    h_t = h_bf.T                                                        # [in_feat, N]

    # torch layout [out, in] is exactly what the lane-dense matmuls need.
    w1h = w1[:, :in_feat].astype(jnp.bfloat16)                          # [inter, in_feat]
    w1e = jnp.pad(w1[:, in_feat:], ((0, 0), (0, E_PAD - E))
                  ).astype(jnp.bfloat16)                                # [inter, E_PAD]
    w2a = w2[:, :in_feat].astype(jnp.bfloat16)                          # [out, in_feat]
    w2b = (w2[:, in_feat:] * (1.0 / D)).astype(jnp.bfloat16)            # [out, inter], mean folded
    b2_2d = b2.reshape(out_feat, 1)

    out = qconv_forward(mh_t, me_t, h_t, w1h, w1e, w2a, w2b, b2_2d, tile_n=2048)
    out = jax.block_until_ready(out)

    # --- pure-JAX reference built from the same bf16-rounded operands -----
    m = jnp.concatenate([h_bf[nbr_idx].astype(jnp.float32),
                         edge_bf.astype(jnp.float32)], axis=-1)         # [N, D, in_feat+3]
    w1_q = jnp.concatenate([w1h.astype(jnp.float32),
                            w1e.astype(jnp.float32)[:, :E]], axis=1)    # [inter, in_feat+3]
    tmp = jnp.einsum('ndf,kf->ndk', m, w1_q)
    tmp = jnp.where(tmp > 0, tmp, 0.01 * tmp)
    h_sum = jnp.sum(tmp, axis=1)                                        # = D * mean
    h_sum_q = h_sum.astype(jnp.bfloat16).astype(jnp.float32)            # kernel rounds h_N to bf16
    ref = jnp.maximum(h_bf.astype(jnp.float32) @ w2a.astype(jnp.float32).T
                      + h_sum_q @ w2b.astype(jnp.float32).T
                      + b2, 0.0)

    assert out.shape == (N, out_feat)
    assert jnp.allclose(out, ref, atol=2e-2, rtol=2e-2), \
        float(jnp.max(jnp.abs(out - ref)))
    print("KERNEL_OK")
</pallas_src>

<mosaic_0001>
module attributes {stable_mosaic.version = 11 : i64} {
  func.func @qconv_kernel(%arg0: i32, %arg1: memref<4x16x128xbf16, #tpu.memory_space<vmem>>, %arg2: memref<4x8x128xbf16, #tpu.memory_space<vmem>>, %arg3: memref<16x128xbf16, #tpu.memory_space<vmem>>, %arg4: memref<32x16xbf16, #tpu.memory_space<vmem>>, %arg5: memref<32x8xbf16, #tpu.memory_space<vmem>>, %arg6: memref<8x16xbf16, #tpu.memory_space<vmem>>, %arg7: memref<8x32xbf16, #tpu.memory_space<vmem>>, %arg8: memref<8x1xf32, #tpu.memory_space<vmem>>, %arg9: memref<8x128xf32, #tpu.memory_space<vmem>>) attributes {dimension_semantics = [#tpu.dimension_semantics<parallel>], iteration_bounds = array<i64: 1>, scalar_prefetch = 0 : i64, scratch_operands = 0 : i64, tpu.core_type = #tpu.core_type<tc>, window_params = [{transform_indices = @transform_0, window_bounds = array<i64: 4, 16, 128>}, {transform_indices = @transform_1, window_bounds = array<i64: 4, 8, 128>}, {transform_indices = @transform_2, window_bounds = array<i64: 16, 128>}, {pipeline_mode = #tpu.pipeline_mode<synchronous>, transform_indices = @transform_3, window_bounds = array<i64: 32, 16>}, {pipeline_mode = #tpu.pipeline_mode<synchronous>, transform_indices = @transform_4, window_bounds = array<i64: 32, 8>}, {pipeline_mode = #tpu.pipeline_mode<synchronous>, transform_indices = @transform_5, window_bounds = array<i64: 8, 16>}, {pipeline_mode = #tpu.pipeline_mode<synchronous>, transform_indices = @transform_6, window_bounds = array<i64: 8, 32>}, {pipeline_mode = #tpu.pipeline_mode<synchronous>, transform_indices = @transform_7, window_bounds = array<i64: 8, 1>}, {transform_indices = @transform_8, window_bounds = array<i64: 8, 128>}]} {
    %c0 = arith.constant 0 : index
    %c0_0 = arith.constant 0 : index
    %0 = vector.load %arg4[%c0, %c0_0] : memref<32x16xbf16, #tpu.memory_space<vmem>>, vector<32x16xbf16>
    %c0_1 = arith.constant 0 : index
    %c0_2 = arith.constant 0 : index
    %c0_3 = arith.constant 0 : index
    %1 = vector.load %arg1[%c0_1, %c0_2, %c0_3] : memref<4x16x128xbf16, #tpu.memory_space<vmem>>, vector<1x16x128xbf16>
    %2 = vector.shape_cast %1 : vector<1x16x128xbf16> to vector<16x128xbf16>
    %cst = arith.constant dense<0.000000e+00> : vector<32x128xf32>
    %3 = tpu.matmul %0, %2, %cst {dimension_numbers = #tpu.dot_dimension_numbers<[1], [0], [0], [1], [0, 0, 1, 1], [], []>} : vector<32x16xbf16>, vector<16x128xbf16>, vector<32x128xf32> -> vector<32x128xf32>
    %c0_4 = arith.constant 0 : index
    %c0_5 = arith.constant 0 : index
    %4 = vector.load %arg5[%c0_4, %c0_5] : memref<32x8xbf16, #tpu.memory_space<vmem>>, vector<32x8xbf16>
    %c0_6 = arith.constant 0 : index
    %c0_7 = arith.constant 0 : index
    %c0_8 = arith.constant 0 : index
    %5 = vector.load %arg2[%c0_6, %c0_7, %c0_8] : memref<4x8x128xbf16, #tpu.memory_space<vmem>>, vector<1x8x128xbf16>
    %6 = vector.shape_cast %5 : vector<1x8x128xbf16> to vector<8x128xbf16>
    %cst_9 = arith.constant dense<0.000000e+00> : vector<32x128xf32>
    %7 = tpu.matmul %4, %6, %cst_9 {dimension_numbers = #tpu.dot_dimension_numbers<[1], [0], [0], [1], [0, 0, 1, 1], [], []>} : vector<32x8xbf16>, vector<8x128xbf16>, vector<32x128xf32> -> vector<32x128xf32>
    %8 = arith.addf %3, %7 : vector<32x128xf32>
    %cst_10 = arith.constant 0.000000e+00 : f32
    %9 = vector.broadcast %cst_10 : f32 to vector<32x128xf32>
    %10 = arith.cmpf ogt, %8, %9 : vector<32x128xf32>
    %cst_11 = arith.constant 0.00999999977 : f32
    %11 = vector.broadcast %cst_11 : f32 to vector<32x128xf32>
    %12 = arith.mulf %11, %8 : vector<32x128xf32>
    %13 = arith.select %10, %8, %12 : vector<32x128xi1>, vector<32x128xf32>
    %c0_12 = arith.constant 0 : index
    %c0_13 = arith.constant 0 : index
    %14 = vector.load %arg4[%c0_12, %c0_13] : memref<32x16xbf16, #tpu.memory_space<vmem>>, vector<32x16xbf16>
    %c1 = arith.constant 1 : index
    %c0_14 = arith.constant 0 : index
    %c0_15 = arith.constant 0 : index
    %15 = vector.load %arg1[%c1, %c0_14, %c0_15] : memref<4x16x128xbf16, #tpu.memory_space<vmem>>, vector<1x16x128xbf16>
    %16 = vector.shape_cast %15 : vector<1x16x128xbf16> to vector<16x128xbf16>
    %cst_16 = arith.constant dense<0.000000e+00> : vector<32x128xf32>
    %17 = tpu.matmul %14, %16, %cst_16 {dimension_numbers = #tpu.dot_dimension_numbers<[1], [0], [0], [1], [0, 0, 1, 1], [], []>} : vector<32x16xbf16>, vector<16x128xbf16>, vector<32x128xf32> -> vector<32x128xf32>
    %c0_17 = arith.constant 0 : index
    %c0_18 = arith.constant 0 : index
    %18 = vector.load %arg5[%c0_17, %c0_18] : memref<32x8xbf16, #tpu.memory_space<vmem>>, vector<32x8xbf16>
    %c1_19 = arith.constant 1 : index
    %c0_20 = arith.constant 0 : index
    %c0_21 = arith.constant 0 : index
    %19 = vector.load %arg2[%c1_19, %c0_20, %c0_21] : memref<4x8x128xbf16, #tpu.memory_space<vmem>>, vector<1x8x128xbf16>
    %20 = vector.shape_cast %19 : vector<1x8x128xbf16> to vector<8x128xbf16>
    %cst_22 = arith.constant dense<0.000000e+00> : vector<32x128xf32>
    %21 = tpu.matmul %18, %20, %cst_22 {dimension_numbers = #tpu.dot_dimension_numbers<[1], [0], [0], [1], [0, 0, 1, 1], [], []>} : vector<32x8xbf16>, vector<8x128xbf16>, vector<32x128xf32> -> vector<32x128xf32>
    %22 = arith.addf %17, %21 : vector<32x128xf32>
    %cst_23 = arith.constant 0.000000e+00 : f32
    %23 = vector.broadcast %cst_23 : f32 to vector<32x128xf32>
    %24 = arith.cmpf ogt, %22, %23 : vector<32x128xf32>
    %cst_24 = arith.constant 0.00999999977 : f32
    %25 = vector.broadcast %cst_24 : f32 to vector<32x128xf32>
    %26 = arith.mulf %25, %22 : vector<32x128xf32>
    %27 = arith.select %24, %22, %26 : vector<32x128xi1>, vector<32x128xf32>
    %28 = arith.addf %13, %27 : vector<32x128xf32>
    %c0_25 = arith.constant 0 : index
    %c0_26 = arith.constant 0 : index
    %29 = vector.load %arg4[%c0_25, %c0_26] : memref<32x16xbf16, #tpu.memory_space<vmem>>, vector<32x16xbf16>
    %c2 = arith.constant 2 : index
    %c0_27 = arith.constant 0 : index
    %c0_28 = arith.constant 0 : index
    %30 = vector.load %arg1[%c2, %c0_27, %c0_28] : memref<4x16x128xbf16, #tpu.memory_space<vmem>>, vector<1x16x128xbf16>
    %31 = vector.shape_cast %30 : vector<1x16x128xbf16> to vector<16x128xbf16>
    %cst_29 = arith.constant dense<0.000000e+00> : vector<32x128xf32>
    %32 = tpu.matmul %29, %31, %cst_29 {dimension_numbers = #tpu.dot_dimension_numbers<[1], [0], [0], [1], [0, 0, 1, 1], [], []>} : vector<32x16xbf16>, vector<16x128xbf16>, vector<32x128xf32> -> vector<32x128xf32>
    %c0_30 = arith.constant 0 : index
    %c0_31 = arith.constant 0 : index
    %33 = vector.load %arg5[%c0_30, %c0_31] : memref<32x8xbf16, #tpu.memory_space<vmem>>, vector<32x8xbf16>
    %c2_32 = arith.constant 2 : index
    %c0_33 = arith.constant 0 : index
    %c0_34 = arith.constant 0 : index
    %34 = vector.load %arg2[%c2_32, %c0_33, %c0_34] : memref<4x8x128xbf16, #tpu.memory_space<vmem>>, vector<1x8x128xbf16>
    %35 = vector.shape_cast %34 : vector<1x8x128xbf16> to vector<8x128xbf16>
    %cst_35 = arith.constant dense<0.000000e+00> : vector<32x128xf32>
    %36 = tpu.matmul %33, %35, %cst_35 {dimension_numbers = #tpu.dot_dimension_numbers<[1], [0], [0], [1], [0, 0, 1, 1], [], []>} : vector<32x8xbf16>, vector<8x128xbf16>, vector<32x128xf32> -> vector<32x128xf32>
    %37 = arith.addf %32, %36 : vector<32x128xf32>
    %cst_36 = arith.constant 0.000000e+00 : f32
    %38 = vector.broadcast %cst_36 : f32 to vector<32x128xf32>
    %39 = arith.cmpf ogt, %37, %38 : vector<32x128xf32>
    %cst_37 = arith.constant 0.00999999977 : f32
    %40 = vector.broadcast %cst_37 : f32 to vector<32x128xf32>
    %41 = arith.mulf %40, %37 : vector<32x128xf32>
    %42 = arith.select %39, %37, %41 : vector<32x128xi1>, vector<32x128xf32>
    %43 = arith.addf %28, %42 : vector<32x128xf32>
    %c0_38 = arith.constant 0 : index
    %c0_39 = arith.constant 0 : index
    %44 = vector.load %arg4[%c0_38, %c0_39] : memref<32x16xbf16, #tpu.memory_space<vmem>>, vector<32x16xbf16>
    %c3 = arith.constant 3 : index
    %c0_40 = arith.constant 0 : index
    %c0_41 = arith.constant 0 : index
    %45 = vector.load %arg1[%c3, %c0_40, %c0_41] : memref<4x16x128xbf16, #tpu.memory_space<vmem>>, vector<1x16x128xbf16>
    %46 = vector.shape_cast %45 : vector<1x16x128xbf16> to vector<16x128xbf16>
    %cst_42 = arith.constant dense<0.000000e+00> : vector<32x128xf32>
    %47 = tpu.matmul %44, %46, %cst_42 {dimension_numbers = #tpu.dot_dimension_numbers<[1], [0], [0], [1], [0, 0, 1, 1], [], []>} : vector<32x16xbf16>, vector<16x128xbf16>, vector<32x128xf32> -> vector<32x128xf32>
    %c0_43 = arith.constant 0 : index
    %c0_44 = arith.constant 0 : index
    %48 = vector.load %arg5[%c0_43, %c0_44] : memref<32x8xbf16, #tpu.memory_space<vmem>>, vector<32x8xbf16>
    %c3_45 = arith.constant 3 : index
    %c0_46 = arith.constant 0 : index
    %c0_47 = arith.constant 0 : index
    %49 = vector.load %arg2[%c3_45, %c0_46, %c0_47] : memref<4x8x128xbf16, #tpu.memory_space<vmem>>, vector<1x8x128xbf16>
    %50 = vector.shape_cast %49 : vector<1x8x128xbf16> to vector<8x128xbf16>
    %cst_48 = arith.constant dense<0.000000e+00> : vector<32x128xf32>
    %51 = tpu.matmul %48, %50, %cst_48 {dimension_numbers = #tpu.dot_dimension_numbers<[1], [0], [0], [1], [0, 0, 1, 1], [], []>} : vector<32x8xbf16>, vector<8x128xbf16>, vector<32x128xf32> -> vector<32x128xf32>
    %52 = arith.addf %47, %51 : vector<32x128xf32>
    %cst_49 = arith.constant 0.000000e+00 : f32
    %53 = vector.broadcast %cst_49 : f32 to vector<32x128xf32>
    %54 = arith.cmpf ogt, %52, %53 : vector<32x128xf32>
    %cst_50 = arith.constant 0.00999999977 : f32
    %55 = vector.broadcast %cst_50 : f32 to vector<32x128xf32>
    %56 = arith.mulf %55, %52 : vector<32x128xf32>
    %57 = arith.select %54, %52, %56 : vector<32x128xi1>, vector<32x128xf32>
    %58 = arith.addf %43, %57 : vector<32x128xf32>
    %c0_51 = arith.constant 0 : index
    %c0_52 = arith.constant 0 : index
    %59 = vector.load %arg6[%c0_51, %c0_52] : memref<8x16xbf16, #tpu.memory_space<vmem>>, vector<8x16xbf16>
    %c0_53 = arith.constant 0 : index
    %c0_54 = arith.constant 0 : index
    %60 = vector.load %arg3[%c0_53, %c0_54] : memref<16x128xbf16, #tpu.memory_space<vmem>>, vector<16x128xbf16>
    %cst_55 = arith.constant dense<0.000000e+00> : vector<8x128xf32>
    %61 = tpu.matmul %59, %60, %cst_55 {dimension_numbers = #tpu.dot_dimension_numbers<[1], [0], [0], [1], [0, 0, 1, 1], [], []>} : vector<8x16xbf16>, vector<16x128xbf16>, vector<8x128xf32> -> vector<8x128xf32>
    %c0_56 = arith.constant 0 : index
    %c0_57 = arith.constant 0 : index
    %62 = vector.load %arg7[%c0_56, %c0_57] : memref<8x32xbf16, #tpu.memory_space<vmem>>, vector<8x32xbf16>
    %63 = arith.truncf %58 : vector<32x128xf32> to vector<32x128xbf16>
    %cst_58 = arith.constant dense<0.000000e+00> : vector<8x128xf32>
    %64 = tpu.matmul %62, %63, %cst_58 {dimension_numbers = #tpu.dot_dimension_numbers<[1], [0], [0], [1], [0, 0, 1, 1], [], []>} : vector<8x32xbf16>, vector<32x128xbf16>, vector<8x128xf32> -> vector<8x128xf32>
    %65 = arith.addf %61, %64 : vector<8x128xf32>
    %c0_59 = arith.constant 0 : index
    %c0_60 = arith.constant 0 : index
    %66 = vector.load %arg8[%c0_59, %c0_60] : memref<8x1xf32, #tpu.memory_space<vmem>>, vector<8x1xf32>
    %67 = vector.broadcast %66 : vector<8x1xf32> to vector<8x128xf32>
    %68 = arith.addf %65, %67 : vector<8x128xf32>
    %cst_61 = arith.constant 0.000000e+00 : f32
    %69 = vector.broadcast %cst_61 : f32 to vector<8x128xf32>
    %70 = arith.maximumf %68, %69 : vector<8x128xf32>
    %c0_62 = arith.constant 0 : index
    %c0_63 = arith.constant 0 : index
    %71 = vector.load %arg9[%c0_62, %c0_63] : memref<8x128xf32, #tpu.memory_space<vmem>>, vector<8x128xf32>
    tpu.vector_store %arg9[%c0_62, %c0_63], %70 {strides = array<i32>} : memref<8x128xf32, #tpu.memory_space<vmem>>, vector<8x128xf32>,
    return
  }
  func.func @transform_0(%arg0: i32) -> (i32, i32, i32) {
    %c0_i32 = arith.constant 0 : i32
    %c0_i32_0 = arith.constant 0 : i32
    %c0_i32_1 = arith.constant 0 : i32
    return %c0_i32, %c0_i32_0, %arg0 : i32, i32, i32
  }
  func.func @transform_1(%arg0: i32) -> (i32, i32, i32) {
    %c0_i32 = arith.constant 0 : i32
    %c0_i32_0 = arith.constant 0 : i32
    %c0_i32_1 = arith.constant 0 : i32
    return %c0_i32, %c0_i32_0, %arg0 : i32, i32, i32
  }
  func.func @transform_2(%arg0: i32) -> (i32, i32) {
    %c0_i32 = arith.constant 0 : i32
    %c0_i32_0 = arith.constant 0 : i32
    return %c0_i32, %arg0 : i32, i32
  }
  func.func @transform_3(%arg0: i32) -> (i32, i32) {
    %c0_i32 = arith.constant 0 : i32
    %c0_i32_0 = arith.constant 0 : i32
    %c0_i32_1 = arith.constant 0 : i32
    return %c0_i32, %c0_i32_0 : i32, i32
  }
  func.func @transform_4(%arg0: i32) -> (i32, i32) {
    %c0_i32 = arith.constant 0 : i32
    %c0_i32_0 = arith.constant 0 : i32
    %c0_i32_1 = arith.constant 0 : i32
    return %c0_i32, %c0_i32_0 : i32, i32
  }
  func.func @transform_5(%arg0: i32) -> (i32, i32) {
    %c0_i32 = arith.constant 0 : i32
    %c0_i32_0 = arith.constant 0 : i32
    %c0_i32_1 = arith.constant 0 : i32
    return %c0_i32, %c0_i32_0 : i32, i32
  }
  func.func @transform_6(%arg0: i32) -> (i32, i32) {
    %c0_i32 = arith.constant 0 : i32
    %c0_i32_0 = arith.constant 0 : i32
    %c0_i32_1 = arith.constant 0 : i32
    return %c0_i32, %c0_i32_0 : i32, i32
  }
  func.func @transform_7(%arg0: i32) -> (i32, i32) {
    %c0_i32 = arith.constant 0 : i32
    %c0_i32_0 = arith.constant 0 : i32
    %c0_i32_1 = arith.constant 0 : i32
    return %c0_i32, %c0_i32_0 : i32, i32
  }
  func.func @transform_8(%arg0: i32) -> (i32, i32) {
    %c0_i32 = arith.constant 0 : i32
    %c0_i32_0 = arith.constant 0 : i32
    return %c0_i32, %arg0 : i32, i32
  }
}

</mosaic_0001>

<llo_original>
// kernel: tpu_custom_call.1
$region0: #{tpu_custom_call.1}
  #allocation0 [shape = 'u32[]', space=smem, size = 0x4, offset = 0x4, fixed_abs, tag = 'smem constant byte address 0x4 - core index']
  #allocation1 [shape = 'u32[72,128]{1,0:T(1,128)}', space=vmem, size = 0x9000, scoped, tag = 'internal scratch']
  %s0 = inlined_call_operand.vmem [shape: bf16[4,16,128], index: 0, kind: input, shape index: {}]
  %s1 = inlined_call_operand.vmem [shape: bf16[4,8,128], index: 1, kind: input, shape index: {}]
  %s2 = inlined_call_operand.hbm [shape: bf16[16,128], index: 2, kind: input, shape index: {}]
  %s3 = inlined_call_operand.vmem [shape: bf16[32,16], index: 3, kind: input, shape index: {}]
  %s4 = inlined_call_operand.vmem [shape: bf16[32,8], index: 4, kind: input, shape index: {}]
  %s5 = inlined_call_operand.vmem [shape: bf16[8,16], index: 5, kind: input, shape index: {}]
  %s6 = inlined_call_operand.vmem [shape: bf16[8,32], index: 6, kind: input, shape index: {}]
  %s7 = inlined_call_operand.vmem [shape: f32[8,1], index: 7, kind: input, shape index: {}]
  %s8 = inlined_call_operand.hbm [shape: f32[8,128], index: 8, kind: output, shape index: {}]
  %s9 = sld [smem:[#allocation0]]
  $region46: #{tpu_custom_call.1} parent=0
    _
  %s11 = ssub.s32 1, %s9
  %s12 = scalar_select 0, %s11, %s9
  $region1: #{tpu_custom_call.1} parent=0
    #allocation2 [shape = 'u8[4096]{0}', space=vmem, size = 0x1000, scoped, tag = 'input window, operand 2, single buffered']
    #allocation3 [shape = 's32[1]{0}', space=sflag, size = 0x4, scoped, tag = 'scoped memory for tpu_custom_call.1']
    #allocation4 [shape = 's32[1]{0}', space=sflag, size = 0x4, scoped, tag = 'scoped memory for tpu_custom_call.1']
    #allocation5 [shape = 'u8[4096]{0}', space=vmem, size = 0x1000, scoped, tag = 'output window, operand 0, single buffered']
    %13 = vsyncpa [#allocation3], 0
    %14 = vsyncpa [#allocation4], 0
    // Predicated region
    $region2: #{tpu_custom_call.1} parent=1 // pred_check
      _
    $region3: #{tpu_custom_call.1} parent=1 // pred_check_branch
      %16 = sbr.rel (0) target = $region5
    $region4: #{tpu_custom_call.1} parent=1 // pred_region
      _
    $region5: #{tpu_custom_call.1} parent=1 // pred_fallthru
      _
    // Predicated region
    $region6: #{tpu_custom_call.1} parent=1 // pred_check
      _
    $region7: #{tpu_custom_call.1} parent=1 // pred_check_branch
      %18 = sbr.rel (0) target = $region9
    $region8: #{tpu_custom_call.1} parent=1 // pred_region
      _
    $region9: #{tpu_custom_call.1} parent=1 // pred_fallthru
      _
    // Predicated region
    $region10: #{tpu_custom_call.1} parent=1 // pred_check
      _
    $region11: #{tpu_custom_call.1} parent=1 // pred_check_branch
      %20 = sbr.rel (0) target = $region13
    $region12: #{tpu_custom_call.1} parent=1 // pred_region
      %22 = vsyncadd [#allocation3], 0
      %s23 = sshll.u32 %s2, 4
      %s24 = int_to_ptr.hbm [resolvable:$true] %s23
      %s25 = sshll.u32 [#allocation2], 4
      %s26 = int_to_ptr.vmem [resolvable:$true] %s25
      %31 = dma.hbm_to_vmem [thread:$0]  %s24, 128, %s26, [#allocation3], 64, 64, 4
    $region13: #{tpu_custom_call.1} parent=1 // pred_fallthru
      _
    // Predicated region
    $region14: #{tpu_custom_call.1} parent=1 // pred_check
      _
    $region15: #{tpu_custom_call.1} parent=1 // pred_check_branch
      %33 = sbr.rel (0) target = $region17
    $region16: #{tpu_custom_call.1} parent=1 // pred_region
      _
    $region17: #{tpu_custom_call.1} parent=1 // pred_fallthru
      _
    // Predicated region
    $region18: #{tpu_custom_call.1} parent=1 // pred_check
      _
    $region19: #{tpu_custom_call.1} parent=1 // pred_check_branch
      %35 = sbr.rel (0) target = $region21
    $region20: #{tpu_custom_call.1} parent=1 // pred_region
      _
    $region21: #{tpu_custom_call.1} parent=1 // pred_fallthru
      _
    // Predicated region
    $region22: #{tpu_custom_call.1} parent=1 // pred_check
      _
    $region23: #{tpu_custom_call.1} parent=1 // pred_check_branch
      %37 = sbr.rel (0) target = $region25
    $region24: #{tpu_custom_call.1} parent=1 // pred_region
      _
    $region25: #{tpu_custom_call.1} parent=1 // pred_fallthru
      _
    // Predicated region
    $region26: #{tpu_custom_call.1} parent=1 // pred_check
      _
    $region27: #{tpu_custom_call.1} parent=1 // pred_check_branch
      %39 = sbr.rel (0) target = $region29
    $region28: #{tpu_custom_call.1} parent=1 // pred_region
      _
    $region29: #{tpu_custom_call.1} parent=1 // pred_fallthru
      _
    // Predicated region
    $region30: #{tpu_custom_call.1} parent=1 // pred_check
      _
    $region31: #{tpu_custom_call.1} parent=1 // pred_check_branch
      %41 = sbr.rel (0) target = $region33
    $region32: #{tpu_custom_call.1} parent=1 // pred_region
      _
    $region33: #{tpu_custom_call.1} parent=1 // pred_fallthru
      _
    // Predicated region
    $region34: #{tpu_custom_call.1} parent=1 // pred_check
      _
    $region35: #{tpu_custom_call.1} parent=1 // pred_check_branch
      %43 = sbr.rel (0) target = $region37
    $region36: #{tpu_custom_call.1} parent=1 // pred_region
      %45 = dma.done [#allocation3], 128
    $region37: #{tpu_custom_call.1} parent=1 // pred_fallthru
      _
    %v47 = vld [vmem:[%s3] sm:$0xf]
    %v48 = vld [vmem:[%s3 + $0x4] sm:$0xf]
    %v49 = vld [vmem:[%s3 + $0x8] sm:$0xf]
    %v50 = vld [vmem:[%s3 + $0xc] sm:$0xf]
    %v51 = vld [vmem:[%s0] sm:$0xf]
    %v52 = vld [vmem:[%s0 + $0x4] sm:$0xf]
    %v53 = vld [vmem:[%s4] sm:$0xf]
    %v54 = vld [vmem:[%s4 + $0x4] sm:$0xf]
    %v55 = vld [vmem:[%s4 + $0x8] sm:$0xf]
    %v56 = vld [vmem:[%s4 + $0xc] sm:$0xf]
    %v57 = vld [vmem:[%s1] sm:$0xf]
    %v62 = vunpack.c.l.b16 %v53
    %v63 = vunpack.c.l.b16 %v54
    %v64 = vunpack.c.l.b16 %v55
    %v65 = vunpack.c.l.b16 %v56
    %v66 = vpack.c.b16 %v63, %v62
    %v67 = vpack.c.b16 %v65, %v64
    %vm68 = vcmask 64512
    %v70 = vsel %vm68, %v66, 0
    %v73 = vsel %vm68, %v67, 0
    %vm75 = vcmask 1043456
    %v77 = vsel %vm75, %v57, 0
    %79 = vmatpush.bf16.msra.mxu0 0
    %80 = vmatpush.bf16.msra.mxu0 0
    %81 = vmatpush.bf16.msra.mxu0 0
    %82 = vmatpush.bf16.msra.mxu0 0
    %83 = vmatpush.bf16.msra.mxu0 0
    %84 = vmatpush.bf16.msra.mxu0 0
    %85 = vmatpush.bf16.msra.mxu0 0
    %86 = vmatpush.bf16.msra.mxu0 %v77
    %87 = vmatmul.bf16.gmra.mxu0 %v70
    %v88 = vpop.f32.mrf.mxu0
    %v89 = vadd.f32 0.0, %v88
    %v90 = vpop.f32.mrf.mxu0
    %v91 = vadd.f32 0.0, %v90
    %92 = vmatmul.bf16.gmra.mxu0 %v73
    %v93 = vpop.f32.mrf.mxu0
    %v94 = vadd.f32 0.0, %v93
    %v95 = vpop.f32.mrf.mxu0
    %v96 = vadd.f32 0.0, %v95
    %97 = vdwg.mxu0
    %v102 = vunpack.c.l.b16 %v47
    %v103 = vunpack.c.l.b16 %v48
    %v104 = vunpack.c.l.b16 %v49
    %v105 = vunpack.c.l.b16 %v50
    %v106 = vpack.c.b16 %v103, %v102
    %v107 = vpack.c.b16 %v105, %v104
    %v110 = vunpack.c.l.b16 %v51
    %v111 = vunpack.c.l.b16 %v52
    %v112 = vpack.c.b16 %v111, %v110
    %vm114 = vcmask 130048
    %v116 = vsel %vm114, %v106, 0
    %v119 = vsel %vm114, %v107, 0
    %121 = vmatpush.bf16.msra.mxu0 0
    %122 = vmatpush.bf16.msra.mxu0 0
    %123 = vmatpush.bf16.msra.mxu0 0
    %124 = vmatpush.bf16.msra.mxu0 0
    %125 = vmatpush.bf16.msra.mxu0 0
    %126 = vmatpush.bf16.msra.mxu0 0
    %127 = vmatpush.bf16.msra.mxu0 0
    %128 = vmatpush.bf16.msra.mxu0 %v112
    %129 = vmatmul.bf16.gmra.mxu0 %v116
    %v130 = vpop.f32.mrf.mxu0
    %v131 = vadd.f32 %v89, %v130
    %v132 = vpop.f32.mrf.mxu0
    %v133 = vadd.f32 %v91, %v132
    %134 = vmatmul.bf16.gmra.mxu0 %v119
    %v135 = vpop.f32.mrf.mxu0
    %v136 = vadd.f32 %v94, %v135
    %v137 = vpop.f32.mrf.mxu0
    %v138 = vadd.f32 %v96, %v137
    %139 = vdwg.mxu0
    %vm140 = vcmp.gt.f32.partialorder %v131, 0.0
    %vm141 = vcmp.gt.f32.partialorder %v133, 0.0
    %vm142 = vcmp.gt.f32.partialorder %v136, 0.0
    %vm143 = vcmp.gt.f32.partialorder %v138, 0.0
    %v144 = vmul.f32 %v131, 0.01
    %v145 = vmul.f32 %v133, 0.01
    %v146 = vmul.f32 %v136, 0.01
    %v147 = vmul.f32 %v138, 0.01
    %v148 = vsel %vm140, %v131, %v144
    %v149 = vsel %vm141, %v133, %v145
    %v150 = vsel %vm142, %v136, %v146
    %v151 = vsel %vm143, %v138, %v147
    %s152 = scalar_lea.vmem %s0, 8
    %v153 = vld [vmem:[%s152] sm:$0xf]
    %v154 = vld [vmem:[%s152 + $0x4] sm:$0xf]
    %s155 = scalar_lea.vmem %s1, 4
    %v156 = vld [vmem:[%s155] sm:$0xf]
    %v158 = vsel %vm75, %v156, 0
    %160 = vmatpush.bf16.msra.mxu0 0
    %161 = vmatpush.bf16.msra.mxu0 0
    %162 = vmatpush.bf16.msra.mxu0 0
    %163 = vmatpush.bf16.msra.mxu0 0
    %164 = vmatpush.bf16.msra.mxu0 0
    %165 = vmatpush.bf16.msra.mxu0 0
    %166 = vmatpush.bf16.msra.mxu0 0
    %167 = vmatpush.bf16.msra.mxu0 %v158
    %168 = vmatmul.bf16.gmra.mxu0 %v70
    %v169 = vpop.f32.mrf.mxu0
    %v170 = vadd.f32 0.0, %v169
    %v171 = vpop.f32.mrf.mxu0
    %v172 = vadd.f32 0.0, %v171
    %173 = vmatmul.bf16.gmra.mxu0 %v73
    %v174 = vpop.f32.mrf.mxu0
    %v175 = vadd.f32 0.0, %v174
    %v176 = vpop.f32.mrf.mxu0
    %v177 = vadd.f32 0.0, %v176
    %178 = vdwg.mxu0
    %v181 = vunpack.c.l.b16 %v153
    %v182 = vunpack.c.l.b16 %v154
    %v183 = vpack.c.b16 %v182, %v181
    %185 = vmatpush.bf16.msra.mxu0 0
    %186 = vmatpush.bf16.msra.mxu0 0
    %187 = vmatpush.bf16.msra.mxu0 0
    %188 = vmatpush.bf16.msra.mxu0 0
    %189 = vmatpush.bf16.msra.mxu0 0
    %190 = vmatpush.bf16.msra.mxu0 0
    %191 = vmatpush.bf16.msra.mxu0 0
    %192 = vmatpush.bf16.msra.mxu0 %v183
    %193 = vmatmul.bf16.gmra.mxu0 %v116
    %v194 = vpop.f32.mrf.mxu0
    %v195 = vadd.f32 %v170, %v194
    %v196 = vpop.f32.mrf.mxu0
    %v197 = vadd.f32 %v172, %v196
    %198 = vmatmul.bf16.gmra.mxu0 %v119
    %v199 = vpop.f32.mrf.mxu0
    %v200 = vadd.f32 %v175, %v199
    %v201 = vpop.f32.mrf.mxu0
    %v202 = vadd.f32 %v177, %v201
    %203 = vdwg.mxu0
    %vm204 = vcmp.gt.f32.partialorder %v195, 0.0
    %vm205 = vcmp.gt.f32.partialorder %v197, 0.0
    %vm206 = vcmp.gt.f32.partialorder %v200, 0.0
    %vm207 = vcmp.gt.f32.partialorder %v202, 0.0
    %v208 = vmul.f32 %v195, 0.01
    %v209 = vmul.f32 %v197, 0.01
    %v210 = vmul.f32 %v200, 0.01
    %v211 = vmul.f32 %v202, 0.01
    %v212 = vsel %vm204, %v195, %v208
    %v213 = vsel %vm205, %v197, %v209
    %v214 = vsel %vm206, %v200, %v210
    %v215 = vsel %vm207, %v202, %v211
    %v216 = vadd.f32 %v148, %v212
    %v217 = vadd.f32 %v149, %v213
    %v218 = vadd.f32 %v150, %v214
    %v219 = vadd.f32 %v151, %v215
    %s220 = scalar_lea.vmem %s0, 16
    %v221 = vld [vmem:[%s220] sm:$0xf]
    %v222 = vld [vmem:[%s220 + $0x4] sm:$0xf]
    %s223 = scalar_lea.vmem %s1, 8
    %v224 = vld [vmem:[%s223] sm:$0xf]
    %v226 = vsel %vm75, %v224, 0
    %228 = vmatpush.bf16.msra.mxu0 0
    %229 = vmatpush.bf16.msra.mxu0 0
    %230 = vmatpush.bf16.msra.mxu0 0
    %231 = vmatpush.bf16.msra.mxu0 0
    %232 = vmatpush.bf16.msra.mxu0 0
    %233 = vmatpush.bf16.msra.mxu0 0
    %234 = vmatpush.bf16.msra.mxu0 0
    %235 = vmatpush.bf16.msra.mxu0 %v226
    %236 = vmatmul.bf16.gmra.mxu0 %v70
    %v237 = vpop.f32.mrf.mxu0
    %v238 = vadd.f32 0.0, %v237
    %v239 = vpop.f32.mrf.mxu0
    %v240 = vadd.f32 0.0, %v239
    %241 = vmatmul.bf16.gmra.mxu0 %v73
    %v242 = vpop.f32.mrf.mxu0
    %v243 = vadd.f32 0.0, %v242
    %v244 = vpop.f32.mrf.mxu0
    %v245 = vadd.f32 0.0, %v244
    %246 = vdwg.mxu0
    %v249 = vunpack.c.l.b16 %v221
    %v250 = vunpack.c.l.b16 %v222
    %v251 = vpack.c.b16 %v250, %v249
    %253 = vmatpush.bf16.msra.mxu0 0
    %254 = vmatpush.bf16.msra.mxu0 0
    %255 = vmatpush.bf16.msra.mxu0 0
    %256 = vmatpush.bf16.msra.mxu0 0
    %257 = vmatpush.bf16.msra.mxu0 0
    %258 = vmatpush.bf16.msra.mxu0 0
    %259 = vmatpush.bf16.msra.mxu0 0
    %260 = vmatpush.bf16.msra.mxu0 %v251
    %261 = vmatmul.bf16.gmra.mxu0 %v116
    %v262 = vpop.f32.mrf.mxu0
    %v263 = vadd.f32 %v238, %v262
    %v264 = vpop.f32.mrf.mxu0
    %v265 = vadd.f32 %v240, %v264
    %266 = vmatmul.bf16.gmra.mxu0 %v119
    %v267 = vpop.f32.mrf.mxu0
    %v268 = vadd.f32 %v243, %v267
    %v269 = vpop.f32.mrf.mxu0
    %v270 = vadd.f32 %v245, %v269
    %271 = vdwg.mxu0
    %vm272 = vcmp.gt.f32.partialorder %v263, 0.0
    %vm273 = vcmp.gt.f32.partialorder %v265, 0.0
    %vm274 = vcmp.gt.f32.partialorder %v268, 0.0
    %vm275 = vcmp.gt.f32.partialorder %v270, 0.0
    %v276 = vmul.f32 %v263, 0.01
    %v277 = vmul.f32 %v265, 0.01
    %v278 = vmul.f32 %v268, 0.01
    %v279 = vmul.f32 %v270, 0.01
    %v280 = vsel %vm272, %v263, %v276
    %v281 = vsel %vm273, %v265, %v277
    %v282 = vsel %vm274, %v268, %v278
    %v283 = vsel %vm275, %v270, %v279
    %v284 = vadd.f32 %v216, %v280
    %v285 = vadd.f32 %v217, %v281
    %v286 = vadd.f32 %v218, %v282
    %v287 = vadd.f32 %v219, %v283
    %s288 = scalar_lea.vmem %s0, 24
    %v289 = vld [vmem:[%s288] sm:$0xf]
    %v290 = vld [vmem:[%s288 + $0x4] sm:$0xf]
    %s291 = scalar_lea.vmem %s1, 12
    %v292 = vld [vmem:[%s291] sm:$0xf]
    %v294 = vsel %vm75, %v292, 0
    %296 = vmatpush.bf16.msra.mxu0 0
    %297 = vmatpush.bf16.msra.mxu0 0
    %298 = vmatpush.bf16.msra.mxu0 0
    %299 = vmatpush.bf16.msra.mxu0 0
    %300 = vmatpush.bf16.msra.mxu0 0
    %301 = vmatpush.bf16.msra.mxu0 0
    %302 = vmatpush.bf16.msra.mxu0 0
    %303 = vmatpush.bf16.msra.mxu0 %v294
    %304 = vmatmul.bf16.gmra.mxu0 %v70
    %v305 = vpop.f32.mrf.mxu0
    %v306 = vadd.f32 0.0, %v305
    %v307 = vpop.f32.mrf.mxu0
    %v308 = vadd.f32 0.0, %v307
    %309 = vmatmul.bf16.gmra.mxu0 %v73
    %v310 = vpop.f32.mrf.mxu0
    %v311 = vadd.f32 0.0, %v310
    %v312 = vpop.f32.mrf.mxu0
    %v313 = vadd.f32 0.0, %v312
    %314 = vdwg.mxu0
    %v317 = vunpack.c.l.b16 %v289
    %v318 = vunpack.c.l.b16 %v290
    %v319 = vpack.c.b16 %v318, %v317
    %321 = vmatpush.bf16.msra.mxu0 0
    %322 = vmatpush.bf16.msra.mxu0 0
    %323 = vmatpush.bf16.msra.mxu0 0
    %324 = vmatpush.bf16.msra.mxu0 0
    %325 = vmatpush.bf16.msra.mxu0 0
    %326 = vmatpush.bf16.msra.mxu0 0
    %327 = vmatpush.bf16.msra.mxu0 0
    %328 = vmatpush.bf16.msra.mxu0 %v319
    %329 = vmatmul.bf16.gmra.mxu0 %v116
    %v330 = vpop.f32.mrf.mxu0
    %v331 = vadd.f32 %v306, %v330
    %v332 = vpop.f32.mrf.mxu0
    %v333 = vadd.f32 %v308, %v332
    %334 = vmatmul.bf16.gmra.mxu0 %v119
    %v335 = vpop.f32.mrf.mxu0
    %v336 = vadd.f32 %v311, %v335
    %v337 = vpop.f32.mrf.mxu0
    %v338 = vadd.f32 %v313, %v337
    %339 = vdwg.mxu0
    %vm340 = vcmp.gt.f32.partialorder %v331, 0.0
    %vm341 = vcmp.gt.f32.partialorder %v333, 0.0
    %vm342 = vcmp.gt.f32.partialorder %v336, 0.0
    %vm343 = vcmp.gt.f32.partialorder %v338, 0.0
    %v344 = vmul.f32 %v331, 0.01
    %v345 = vmul.f32 %v333, 0.01
    %v346 = vmul.f32 %v336, 0.01
    %v347 = vmul.f32 %v338, 0.01
    %v348 = vsel %vm340, %v331, %v344
    %v349 = vsel %vm341, %v333, %v345
    %v350 = vsel %vm342, %v336, %v346
    %v351 = vsel %vm343, %v338, %v347
    %v352 = vadd.f32 %v284, %v348
    %v353 = vadd.f32 %v285, %v349
    %v354 = vadd.f32 %v286, %v350
    %v355 = vadd.f32 %v287, %v351
    %v356 = vld [vmem:[%s5] sm:$0xf]
    %v357 = vld [vmem:[#allocation2] sm:$0xf]
    %v358 = vld [vmem:[#allocation2 + $0x4] sm:$0xf]
    %v359 = vld [vmem:[%s6] sm:$0xf]
    %v360 = vpack.c.bf16 %v353, %v352
    %v361 = vpack.c.bf16 %v355, %v354
    %vm362 = vcmask 261120
    %v364 = vsel %vm362, %v359, 0
    %366 = vmatpush.bf16.msra.mxu0 0
    %367 = vmatpush.bf16.msra.mxu0 0
    %368 = vmatpush.bf16.msra.mxu0 0
    %369 = vmatpush.bf16.msra.mxu0 0
    %370 = vmatpush.bf16.msra.mxu0 0
    %371 = vmatpush.bf16.msra.mxu0 0
    %372 = vmatpush.bf16.msra.mxu0 %v361
    %373 = vmatpush.bf16.msra.mxu0 %v360
    %374 = vmatmul.bf16.gmra.mxu0 %v364
    %v375 = vpop.f32.mrf.mxu0
    %v376 = vadd.f32 0.0, %v375
    %v377 = vpop.f32.mrf.mxu0
    %378 = vdwg.mxu0
    %v381 = vunpack.c.l.b16 %v357
    %v382 = vunpack.c.l.b16 %v358
    %v383 = vpack.c.b16 %v382, %v381
    %v386 = vsel %vm114, %v356, 0
    %388 = vmatpush.bf16.msra.mxu0 0
    %389 = vmatpush.bf16.msra.mxu0 0
    %390 = vmatpush.bf16.msra.mxu0 0
    %391 = vmatpush.bf16.msra.mxu0 0
    %392 = vmatpush.bf16.msra.mxu0 0
    %393 = vmatpush.bf16.msra.mxu0 0
    %394 = vmatpush.bf16.msra.mxu0 0
    %395 = vmatpush.bf16.msra.mxu0 %v383
    %396 = vmatmul.bf16.gmra.mxu0 %v386
    %v397 = vpop.f32.mrf.mxu0
    %v398 = vadd.f32 %v376, %v397
    %v399 = vpop.f32.mrf.mxu0
    %400 = vdwg.mxu0
    %v401 = vld [vmem:[%s7] sm:$0xff]
    %403 = vset.pattern.permute.xlu0 0
    %404 = vperm.xlu0 %403, %v401
    %v405 = vpop.permute.xlu0 %404
    %v407 = vadd.f32 %v398, %v405
    %v408 = vmax.f32 %v407, 0.0
    %409 = vst [vmem:[#allocation5] sm:$0xff] %v408
    // Predicated region
    $region38: #{tpu_custom_call.1} parent=1 // pred_check
      _
    $region39: #{tpu_custom_call.1} parent=1 // pred_check_branch
      %411 = sbr.rel (0) target = $region41
    $region40: #{tpu_custom_call.1} parent=1 // pred_region
      %413 = vsyncadd [#allocation4], 0
      %s415 = sshll.u32 [#allocation5], 4
      %s416 = int_to_ptr.vmem [resolvable:$true] %s415
      %s417 = sshll.u32 %s8, 4
      %s418 = int_to_ptr.hbm [resolvable:$true] %s417
      %420 = dma.vmem_to_hbm [thread:$0]  %s416, 128, %s418, [#allocation4]
    $region41: #{tpu_custom_call.1} parent=1 // pred_fallthru
      _
    // Predicated region
    $region42: #{tpu_custom_call.1} parent=1 // pred_check
      _
    $region43: #{tpu_custom_call.1} parent=1 // pred_check_branch
      %422 = sbr.rel (0) target = $region45
    $region44: #{tpu_custom_call.1} parent=1 // pred_region
      %424 = dma.done [#allocation4], 128
    $region45: #{tpu_custom_call.1} parent=1 // pred_fallthru
      _
    %425 = vsyncpa [#allocation3], 1
    %426 = vsyncpa [#allocation4], 1

</llo_original>
